<compile_context>
chip_gen: v5e
topology: v5e:2x2
jax: 0.10.0
libtpu: 0.0.40
codegen_flags: <defaults>
</compile_context>

<pallas_src>
import functools

import jax
import jax.numpy as jnp
from jax.experimental import pallas as pl
from jax.experimental.pallas import tpu as pltpu

C_IN = 3          # RGB channels per image
C_CAT = 2 * C_IN  # concat([imagel, imager]) channels fed to the flow head


def _depth_kernel(baseline_ref, w_ref, il_ref, ir_ref, out_ref, *, inv_scale):
    # baseline_ref: (N,)        f32 in SMEM (scalar prefetch)
    # w_ref:        (C_CAT,)    f32 in SMEM (scalar prefetch) -- flow-head row 0
    # il_ref/ir_ref:(1, C_IN, TR, L) VMEM tiles for (batch n, row-tile j)
    # out_ref:      (1, 1, TR, L)    VMEM tile of the depth output
    n = pl.program_id(0)
    neg_b = -(baseline_ref[n] * inv_scale)   # fold negate + /8 into one scalar

    # 1x1 conv producing the horizontal flow channel (flow[:, 0]):
    #   flow0[p] = sum_c W[c] * concat(imagel, imager)[c, p]
    # Accumulation starts from the first product (no vreg zero-fill); inputs
    # are cast to f32 per channel (no-op for f32, packed->f32 for bf16).
    flow0 = w_ref[0] * il_ref[0, 0].astype(jnp.float32)
    for c in range(1, C_IN):
        flow0 = flow0 + w_ref[c] * il_ref[0, c].astype(jnp.float32)
    for c in range(C_IN):
        flow0 = flow0 + w_ref[c + C_IN] * ir_ref[0, c].astype(jnp.float32)

    # depth = baseline / -flow0  ==  (-baseline*inv_scale) / flow0
    # Exact divide (not approx reciprocal) for parity near the 0/250 thresholds.
    depth = neg_b / flow0

    # valid = (depth > 0) & (depth <= 250); depth[~valid] = 0
    # (NaN/inf from flow0 == 0 compare False -> zeroed, matching the reference.)
    valid = (depth > 0.0) & (depth <= 250.0)
    out_ref[0, 0] = jnp.where(valid, depth, 0.0)


def _choose_lane_layout(h, w):
    """Pick a lane-dense (lanes, rows) view of a contiguous (H, W) plane."""
    if w % 128 == 0:
        return w, h                      # already lane-dense, keep (H, W)
    p = h * w
    for lane in (2048, 1024, 512, 256, 128):
        if p % lane == 0:                # free row-major reshape of the plane
            return lane, p // lane
    return w, h                          # odd total size: masked partial stores


def _vmem_defaults():
    """(tile target bytes, vmem_limit_bytes) chosen per TPU generation."""
    phys = 64 * 1024 * 1024              # conservative (v7x) if query fails
    try:
        phys = pltpu.get_tpu_info().vmem_capacity_bytes
    except Exception:
        pass
    if phys >= 128 * 1024 * 1024:        # v5e / v6e: plenty of VMEM headroom
        return 16 * 1024 * 1024, 64 * 1024 * 1024
    return 12 * 1024 * 1024, 32 * 1024 * 1024   # v7x: 64 MiB physical / TC


def _pick_tile_rows(r, l, align, bytes_per_px, target_bytes, n,
                    min_total_steps=8):
    """Largest sublane-aligned row tile that (a) keeps the double-buffered VMEM
    footprint under target_bytes and (b) yields >= min_total_steps total grid
    steps (DMA/compute overlap + v7x megacore work), while dividing r."""
    if r < align or r % align != 0:
        return r                          # full-extent block (valid per spec)
    cap_vmem = target_bytes // (bytes_per_px * l)
    steps_per_batch = -(-min_total_steps // max(n, 1))      # ceil
    cap_steps = r // steps_per_batch
    cap = max(align, (min(cap_vmem, cap_steps) // align) * align)
    tr = min(cap, r)
    while tr > align and r % tr != 0:     # prefer tiles that divide r exactly
        tr -= align
    return tr if r % tr == 0 else r


def depth_estimator_forward(imagel, imager, baseline, flow_w, upsample=True, *,
                            min_total_steps=8, vmem_target_bytes=None):
    """imagel, imager: (N, 3, H, W) f32 or bf16 (NCHW); baseline: (N,) f32.

    Returns depth of shape (N, 1, H, W) f32."""
    n, c, h, w = imagel.shape
    assert c == C_IN and imager.shape == imagel.shape
    assert imager.dtype == imagel.dtype
    inv_scale = 1.0 if upsample else 1.0 / 8.0

    # Only row 0 of the flow head is consumed (flow[:, 0]) -> tiny 1-D SMEM.
    flow_w_row = jnp.asarray(flow_w, jnp.float32)[0].reshape(C_CAT)
    baseline = jnp.asarray(baseline, jnp.float32).reshape(n)

    in_itemsize = jnp.dtype(imagel.dtype).itemsize

    # Lane-dense spatial layout (free reshape: NCHW channel planes are
    # contiguous in HBM).  Kernel math is purely elementwise, so any
    # row-major re-view of the spatial dims is exact.
    l, r = _choose_lane_layout(h, w)
    if (l, r) != (w, h):
        imagel = imagel.reshape(n, C_IN, r, l)
        imager = imager.reshape(n, C_IN, r, l)

    target, vmem_limit = _vmem_defaults()
    if vmem_target_bytes is not None:
        target = vmem_target_bytes

    align = 16 if in_itemsize < 4 else 8   # bf16 packs 16 rows / sublane vreg
    # Double-buffered I/O (2 images in native dtype + f32 out) + ~16 B/px of
    # elementwise temporaries (f32 casts, flow accumulator, depth, mask).
    bytes_per_px = 2 * (2 * C_IN * in_itemsize + 4) + 16
    tr = _pick_tile_rows(r, l, align, bytes_per_px, target, n, min_total_steps)
    n_r = r // tr if r % tr == 0 else 1

    kernel = functools.partial(_depth_kernel, inv_scale=inv_scale)

    grid_spec = pltpu.PrefetchScalarGridSpec(
        num_scalar_prefetch=2,             # baseline, flow-head row -> SMEM
        grid=(n, n_r),
        in_specs=[
            pl.BlockSpec((1, C_IN, tr, l), lambda i, j, b, fw: (i, 0, j, 0)),
            pl.BlockSpec((1, C_IN, tr, l), lambda i, j, b, fw: (i, 0, j, 0)),
        ],
        out_specs=pl.BlockSpec((1, 1, tr, l), lambda i, j, b, fw: (i, 0, j, 0)),
    )

    depth = pl.pallas_call(
        kernel,
        out_shape=jax.ShapeDtypeStruct((n, 1, r, l), jnp.float32),
        grid_spec=grid_spec,
        compiler_params=pltpu.CompilerParams(
            dimension_semantics=("parallel", "parallel"),
            vmem_limit_bytes=vmem_limit),
    )(baseline, flow_w_row, imagel, imager)

    return depth.reshape(n, 1, h, w)


def _reference(imagel, imager, baseline, flow_w, upsample=True):
    """Pure-JAX reference for the same computation (sanity check)."""
    x = jnp.concatenate([imagel.astype(jnp.float32),
                         imager.astype(jnp.float32)], axis=1)      # (N, 6, H, W)
    flow = jnp.einsum("oc,nchw->nohw", flow_w, x)                  # (N, 2, H, W)
    depth = baseline[:, None, None] / (-flow[:, 0])
    if not upsample:
        depth = depth / 8.0
    valid = (depth > 0.0) & (depth <= 250.0)
    depth = jnp.where(valid, depth, 0.0)
    return depth[:, None]                                          # (N, 1, H, W)


if __name__ == "__main__":
    key = jax.random.PRNGKey(0)
    k_il, k_ir, k_w = jax.random.split(key, 3)

    N, H, W = 2, 16, 128
    # Inputs shaped so flow0 is bounded away from 0 / the 250 threshold
    # (avoids comparing near singularities where 1-ulp ordering differences
    #  between the kernel's sequential sum and XLA's einsum would matter).
    imagel = jax.random.uniform(k_il, (N, C_IN, H, W), jnp.float32, 0.25, 1.0)
    imager = jax.random.uniform(k_ir, (N, C_IN, H, W), jnp.float32, 0.25, 1.0)
    baseline = jnp.array([4.5, 5.5], dtype=jnp.float32)            # (N,)

    # Deterministic synthetic flow-head weights (stand-in for RAFT output).
    flow_w = -jax.random.uniform(k_w, (2, C_CAT), jnp.float32, 0.05, 1.0)

    # 1) f32 path, lane-dense width, min-step row tiling (grid = (2, 2) here).
    ref = _reference(imagel, imager, baseline, flow_w, upsample=True)
    depth = jax.block_until_ready(
        depth_estimator_forward(imagel, imager, baseline, flow_w, upsample=True))
    assert depth.shape == (N, 1, H, W)
    assert jnp.allclose(depth, ref, atol=1e-5, rtol=1e-5), "mismatch (f32)"

    # 2) bf16 inputs pass through the BlockSpec DMA as bf16 (halved reads).
    il16 = imagel.astype(jnp.bfloat16)
    ir16 = imager.astype(jnp.bfloat16)
    ref16 = _reference(il16, ir16, baseline, flow_w, upsample=True)
    d16 = jax.block_until_ready(
        depth_estimator_forward(il16, ir16, baseline, flow_w, upsample=True))
    assert jnp.allclose(d16, ref16, atol=1e-4, rtol=1e-4), "mismatch (bf16)"

    # 3) odd width (W=96, not a multiple of 128) -> lane-dense reshape path,
    #    plus the upsample=False (/8) branch.
    W2 = 96
    il2 = jax.random.uniform(k_il, (N, C_IN, H, W2), jnp.float32, 0.25, 1.0)
    ir2 = jax.random.uniform(k_ir, (N, C_IN, H, W2), jnp.float32, 0.25, 1.0)
    ref2 = _reference(il2, ir2, baseline, flow_w, upsample=False)
    d2 = jax.block_until_ready(
        depth_estimator_forward(il2, ir2, baseline, flow_w, upsample=False))
    assert d2.shape == (N, 1, H, W2)
    assert jnp.allclose(d2, ref2, atol=1e-5, rtol=1e-5), "mismatch (odd width)"

    print("KERNEL_OK")
</pallas_src>

<mosaic_0001>
module attributes {stable_mosaic.version = 11 : i64} {
  func.func @_depth_kernel(%arg0: i32, %arg1: i32, %arg2: memref<2xf32, #tpu.memory_space<smem>>, %arg3: memref<6xf32, #tpu.memory_space<smem>>, %arg4: memref<1x3x8x128xf32, #tpu.memory_space<vmem>>, %arg5: memref<1x3x8x128xf32, #tpu.memory_space<vmem>>, %arg6: memref<1x1x8x128xf32, #tpu.memory_space<vmem>>) attributes {dimension_semantics = [#tpu.dimension_semantics<parallel>, #tpu.dimension_semantics<parallel>], iteration_bounds = array<i64: 2, 2>, scalar_prefetch = 2 : i64, scratch_operands = 0 : i64, tpu.core_type = #tpu.core_type<tc>, window_params = [{transform_indices = @transform_0, window_bounds = array<i64: 1, 3, 8, 128>}, {transform_indices = @transform_1, window_bounds = array<i64: 1, 3, 8, 128>}, {transform_indices = @transform_2, window_bounds = array<i64: 1, 1, 8, 128>}]} {
    %0 = arith.index_cast %arg0 : i32 to index
    %1 = memref.load %arg2[%0] : memref<2xf32, #tpu.memory_space<smem>>
    %cst = arith.constant 1.000000e+00 : f32
    %2 = arith.mulf %1, %cst : f32
    %cst_0 = arith.constant 0.000000e+00 : f32
    %3 = arith.subf %cst_0, %2 : f32
    %c0 = arith.constant 0 : index
    %4 = memref.load %arg3[%c0] : memref<6xf32, #tpu.memory_space<smem>>
    %c0_1 = arith.constant 0 : index
    %c0_2 = arith.constant 0 : index
    %c0_3 = arith.constant 0 : index
    %c0_4 = arith.constant 0 : index
    %5 = vector.load %arg4[%c0_1, %c0_2, %c0_3, %c0_4] : memref<1x3x8x128xf32, #tpu.memory_space<vmem>>, vector<1x1x8x128xf32>
    %6 = vector.shape_cast %5 : vector<1x1x8x128xf32> to vector<8x128xf32>
    %7 = vector.broadcast %4 : f32 to vector<8x128xf32>
    %8 = arith.mulf %7, %6 : vector<8x128xf32>
    %c1 = arith.constant 1 : index
    %9 = memref.load %arg3[%c1] : memref<6xf32, #tpu.memory_space<smem>>
    %c0_5 = arith.constant 0 : index
    %c1_6 = arith.constant 1 : index
    %c0_7 = arith.constant 0 : index
    %c0_8 = arith.constant 0 : index
    %10 = vector.load %arg4[%c0_5, %c1_6, %c0_7, %c0_8] : memref<1x3x8x128xf32, #tpu.memory_space<vmem>>, vector<1x1x8x128xf32>
    %11 = vector.shape_cast %10 : vector<1x1x8x128xf32> to vector<8x128xf32>
    %12 = vector.broadcast %9 : f32 to vector<8x128xf32>
    %13 = arith.mulf %12, %11 : vector<8x128xf32>
    %14 = arith.addf %8, %13 : vector<8x128xf32>
    %c2 = arith.constant 2 : index
    %15 = memref.load %arg3[%c2] : memref<6xf32, #tpu.memory_space<smem>>
    %c0_9 = arith.constant 0 : index
    %c2_10 = arith.constant 2 : index
    %c0_11 = arith.constant 0 : index
    %c0_12 = arith.constant 0 : index
    %16 = vector.load %arg4[%c0_9, %c2_10, %c0_11, %c0_12] : memref<1x3x8x128xf32, #tpu.memory_space<vmem>>, vector<1x1x8x128xf32>
    %17 = vector.shape_cast %16 : vector<1x1x8x128xf32> to vector<8x128xf32>
    %18 = vector.broadcast %15 : f32 to vector<8x128xf32>
    %19 = arith.mulf %18, %17 : vector<8x128xf32>
    %20 = arith.addf %14, %19 : vector<8x128xf32>
    %c3 = arith.constant 3 : index
    %21 = memref.load %arg3[%c3] : memref<6xf32, #tpu.memory_space<smem>>
    %c0_13 = arith.constant 0 : index
    %c0_14 = arith.constant 0 : index
    %c0_15 = arith.constant 0 : index
    %c0_16 = arith.constant 0 : index
    %22 = vector.load %arg5[%c0_13, %c0_14, %c0_15, %c0_16] : memref<1x3x8x128xf32, #tpu.memory_space<vmem>>, vector<1x1x8x128xf32>
    %23 = vector.shape_cast %22 : vector<1x1x8x128xf32> to vector<8x128xf32>
    %24 = vector.broadcast %21 : f32 to vector<8x128xf32>
    %25 = arith.mulf %24, %23 : vector<8x128xf32>
    %26 = arith.addf %20, %25 : vector<8x128xf32>
    %c4 = arith.constant 4 : index
    %27 = memref.load %arg3[%c4] : memref<6xf32, #tpu.memory_space<smem>>
    %c0_17 = arith.constant 0 : index
    %c1_18 = arith.constant 1 : index
    %c0_19 = arith.constant 0 : index
    %c0_20 = arith.constant 0 : index
    %28 = vector.load %arg5[%c0_17, %c1_18, %c0_19, %c0_20] : memref<1x3x8x128xf32, #tpu.memory_space<vmem>>, vector<1x1x8x128xf32>
    %29 = vector.shape_cast %28 : vector<1x1x8x128xf32> to vector<8x128xf32>
    %30 = vector.broadcast %27 : f32 to vector<8x128xf32>
    %31 = arith.mulf %30, %29 : vector<8x128xf32>
    %32 = arith.addf %26, %31 : vector<8x128xf32>
    %c5 = arith.constant 5 : index
    %33 = memref.load %arg3[%c5] : memref<6xf32, #tpu.memory_space<smem>>
    %c0_21 = arith.constant 0 : index
    %c2_22 = arith.constant 2 : index
    %c0_23 = arith.constant 0 : index
    %c0_24 = arith.constant 0 : index
    %34 = vector.load %arg5[%c0_21, %c2_22, %c0_23, %c0_24] : memref<1x3x8x128xf32, #tpu.memory_space<vmem>>, vector<1x1x8x128xf32>
    %35 = vector.shape_cast %34 : vector<1x1x8x128xf32> to vector<8x128xf32>
    %36 = vector.broadcast %33 : f32 to vector<8x128xf32>
    %37 = arith.mulf %36, %35 : vector<8x128xf32>
    %38 = arith.addf %32, %37 : vector<8x128xf32>
    %39 = vector.broadcast %3 : f32 to vector<8x128xf32>
    %40 = arith.divf %39, %38 : vector<8x128xf32>
    %cst_25 = arith.constant 0.000000e+00 : f32
    %41 = vector.broadcast %cst_25 : f32 to vector<8x128xf32>
    %42 = arith.cmpf ogt, %40, %41 : vector<8x128xf32>
    %cst_26 = arith.constant 2.500000e+02 : f32
    %43 = vector.broadcast %cst_26 : f32 to vector<8x128xf32>
    %44 = arith.cmpf ole, %40, %43 : vector<8x128xf32>
    %45 = arith.andi %42, %44 : vector<8x128xi1>
    %cst_27 = arith.constant 0.000000e+00 : f32
    %46 = vector.broadcast %cst_27 : f32 to vector<8x128xf32>
    %47 = arith.select %45, %40, %46 : vector<8x128xi1>, vector<8x128xf32>
    %c0_28 = arith.constant 0 : index
    %c0_29 = arith.constant 0 : index
    %c0_30 = arith.constant 0 : index
    %c0_31 = arith.constant 0 : index
    %48 = vector.load %arg6[%c0_28, %c0_29, %c0_30, %c0_31] : memref<1x1x8x128xf32, #tpu.memory_space<vmem>>, vector<1x1x8x128xf32>
    %49 = vector.shape_cast %48 : vector<1x1x8x128xf32> to vector<8x128xf32>
    %50 = vector.shape_cast %47 : vector<8x128xf32> to vector<1x1x8x128xf32>
    tpu.vector_store %arg6[%c0_28, %c0_29, %c0_30, %c0_31], %50 {strides = array<i32>} : memref<1x1x8x128xf32, #tpu.memory_space<vmem>>, vector<1x1x8x128xf32>,
    return
  }
  func.func @transform_0(%arg0: i32, %arg1: i32, %arg2: memref<2xf32, #tpu.memory_space<smem>>, %arg3: memref<6xf32, #tpu.memory_space<smem>>) -> (i32, i32, i32, i32) {
    %c0_i32 = arith.constant 0 : i32
    %c0_i32_0 = arith.constant 0 : i32
    %c0_i32_1 = arith.constant 0 : i32
    return %arg0, %c0_i32, %arg1, %c0_i32_0 : i32, i32, i32, i32
  }
  func.func @transform_1(%arg0: i32, %arg1: i32, %arg2: memref<2xf32, #tpu.memory_space<smem>>, %arg3: memref<6xf32, #tpu.memory_space<smem>>) -> (i32, i32, i32, i32) {
    %c0_i32 = arith.constant 0 : i32
    %c0_i32_0 = arith.constant 0 : i32
    %c0_i32_1 = arith.constant 0 : i32
    return %arg0, %c0_i32, %arg1, %c0_i32_0 : i32, i32, i32, i32
  }
  func.func @transform_2(%arg0: i32, %arg1: i32, %arg2: memref<2xf32, #tpu.memory_space<smem>>, %arg3: memref<6xf32, #tpu.memory_space<smem>>) -> (i32, i32, i32, i32) {
    %c0_i32 = arith.constant 0 : i32
    %c0_i32_0 = arith.constant 0 : i32
    %c0_i32_1 = arith.constant 0 : i32
    return %arg0, %c0_i32, %arg1, %c0_i32_0 : i32, i32, i32, i32
  }
}

</mosaic_0001>

<llo_original>
// kernel: tpu_custom_call.1
$region0: #{tpu_custom_call.1}
  #allocation0 [shape = 'u32[]', space=smem, size = 0x4, offset = 0x4, fixed_abs, tag = 'smem constant byte address 0x4 - core index']
  #allocation1 [shape = 'u32[72,128]{1,0:T(1,128)}', space=vmem, size = 0x9000, scoped, tag = 'internal scratch']
  #allocation2 [shape = 's32[1]{0}', space=sflag, size = 0x4, scoped, tag = 'scoped memory for tpu_custom_call.1']
  #allocation3 [shape = 'u8[512]{0}', space=smem, size = 0x200, scoped, tag = 'prefetched SMEM operand 0']
  #allocation4 [shape = 'u8[512]{0}', space=smem, size = 0x200, scoped, tag = 'prefetched SMEM operand 1']
  %s0 = inlined_call_operand.hbm [shape: f32[2], index: 0, kind: input, shape index: {}]
  %s1 = inlined_call_operand.hbm [shape: f32[6], index: 1, kind: input, shape index: {}]
  %s2 = inlined_call_operand.hbm [shape: f32[2,3,16,128], index: 2, kind: input, shape index: {}]
  %s3 = inlined_call_operand.hbm [shape: f32[2,3,16,128], index: 3, kind: input, shape index: {}]
  %s4 = inlined_call_operand.hbm [shape: f32[2,1,16,128], index: 4, kind: output, shape index: {}]
  %s5 = sld [smem:[#allocation0]]
  $region49: #{tpu_custom_call.1} parent=0
    _
  %s7 = ssub.s32 1, %s5
  %s8 = scalar_select 0, %s7, %s5
  %s10 = sshll.u32 %s0, 4
  %s11 = int_to_ptr.hbm [resolvable:$true] %s10
  %13 = dma.hbm_to_smem %s11, 16, [#allocation3], [#allocation2]
  %s15 = sshll.u32 %s1, 4
  %s16 = int_to_ptr.hbm [resolvable:$true] %s15
  %18 = dma.hbm_to_smem %s16, 16, [#allocation4], [#allocation2]
  %20 = dma.done [#allocation2], 32
  %21 = sfence
  $region1: #{tpu_custom_call.1} parent=0
    #allocation5 [shape = 'u8[24576]{0}', space=vmem, size = 0x6000, scoped, tag = 'input window, operand 2']
    #allocation6 [shape = 's32[2]{0}', space=sflag, size = 0x8, scoped, tag = 'scoped memory for tpu_custom_call.1']
    #allocation7 [shape = 's32[2]{0}', space=sflag, size = 0x8, scoped, tag = 'scoped memory for tpu_custom_call.1']
    #allocation8 [shape = 'u8[24576]{0}', space=vmem, size = 0x6000, scoped, tag = 'input window, operand 3']
    #allocation9 [shape = 's32[2]{0}', space=sflag, size = 0x8, scoped, tag = 'scoped memory for tpu_custom_call.1']
    #allocation10 [shape = 'u8[8192]{0}', space=vmem, size = 0x2000, scoped, tag = 'output window, operand 0']
    %22 = vsyncpa [#allocation6], 0
    %s23 = scalar_lea.sflag [#allocation6], 1
    %24 = vsyncpa %s23, 0
    %25 = vsyncpa [#allocation9], 0
    %s26 = scalar_lea.sflag [#allocation9], 1
    %27 = vsyncpa %s26, 0
    %28 = vsyncpa [#allocation7], 0
    %s29 = scalar_lea.sflag [#allocation7], 1
    %30 = vsyncpa %s29, 0
    loop: start=0, step=1, limit=6
    $region2: #{tpu_custom_call.1} parent=1 // loop_pre_header
      _
    $region3: #{tpu_custom_call.1} parent=1 // loop_header
      %s32 = sphi 0, %s36
      %p33 = scmp.ge.s32.totalorder %s32, 6
      %s39 = sphi 0, %s51
      %s40 = sphi 0, %s47
      %s41 = sphi 0, %s39
      %s42 = sphi 0, %s40
      %s43 = sphi 0, %s41
      %s44 = sphi 0, %s42
      %s56 = sphi 0, %s58
      %s59 = sphi 0, %s56
      %s60 = sphi 0, %s59
      %s76 = sphi 0, %s60
      %s84 = sphi 0, %s86
      %s87 = sphi 0, %s84
      %s88 = sphi 0, %s87
      %s104 = sphi 0, %s88
      %s112 = sphi 0, %s114
      %s115 = sphi 0, %s112
      %s116 = sphi 0, %s115
      %s132 = sphi 0, %s116
    $region4: #{tpu_custom_call.1} parent=1 // loop_header_branch
      %35 = sbr.rel (%p33) target = $region8
    $region5: #{tpu_custom_call.1} parent=1 // loop_body
      %s37 = ssub.s32 %s32, 1
      %s38 = ssub.s32 %s32, 2
      %s45 = sadd.s32 1, %s40
      %p46 = scmp.ge.s32.totalorder %s45, 2
      %s47 = scalar_select %p46, 0, %s45
      %s48 = sadd.s32 1, %s39
      %s49 = scalar_select %p46, %s48, %s39
      %p50 = scmp.ge.s32.totalorder %s49, 2
      %s51 = scalar_select %p50, 0, %s49
      %s52 = ssub.s32 %s39, %s51
      %s53 = ssub.s32 %s40, %s47
      %s54 = sor.u32 %s52, %s53
      %p55 = scmp.eq.s32.totalorder %s54, 0
      %s57 = sadd.s32 %s56, 1
      %s58 = scalar_select %p55, %s56, %s57
      %p61 = pneg %p55
      %p62 = scmp.eq.s32.totalorder %s32, 3
      %p63 = por %p61, %p62
      %p64 = scmp.ne.s32.totalorder %s56, %s59
      %p65 = scmp.eq.s32.totalorder %s32, 0
      %p66 = por %p64, %p65
      %p67 = scmp.ne.s32.totalorder %s56, %s59
      %p68 = scmp.eq.s32.totalorder %s37, 3
      %p69 = por %p67, %p68
      %p70 = scmp.ne.s32.totalorder %s59, %s60
      %p71 = scmp.eq.s32.totalorder %s37, 0
      %p72 = por %p70, %p71
      %p73 = scmp.ne.s32.totalorder %s59, %s60
      %p74 = scmp.eq.s32.totalorder %s38, 3
      %p75 = por %p73, %p74
      %p77 = scmp.ne.s32.totalorder %s60, %s76
      %p78 = scmp.eq.s32.totalorder %s38, 0
      %p79 = por %p77, %p78
      %s80 = ssub.s32 %s39, %s51
      %s81 = ssub.s32 %s40, %s47
      %s82 = sor.u32 %s80, %s81
      %p83 = scmp.eq.s32.totalorder %s82, 0
      %s85 = sadd.s32 %s84, 1
      %s86 = scalar_select %p83, %s84, %s85
      %p89 = pneg %p83
      %p90 = scmp.eq.s32.totalorder %s32, 3
      %p91 = por %p89, %p90
      %p92 = scmp.ne.s32.totalorder %s84, %s87
      %p93 = scmp.eq.s32.totalorder %s32, 0
      %p94 = por %p92, %p93
      %p95 = scmp.ne.s32.totalorder %s84, %s87
      %p96 = scmp.eq.s32.totalorder %s37, 3
      %p97 = por %p95, %p96
      %p98 = scmp.ne.s32.totalorder %s87, %s88
      %p99 = scmp.eq.s32.totalorder %s37, 0
      %p100 = por %p98, %p99
      %p101 = scmp.ne.s32.totalorder %s87, %s88
      %p102 = scmp.eq.s32.totalorder %s38, 3
      %p103 = por %p101, %p102
      %p105 = scmp.ne.s32.totalorder %s88, %s104
      %p106 = scmp.eq.s32.totalorder %s38, 0
      %p107 = por %p105, %p106
      %s108 = ssub.s32 %s39, %s51
      %s109 = ssub.s32 %s40, %s47
      %s110 = sor.u32 %s108, %s109
      %p111 = scmp.eq.s32.totalorder %s110, 0
      %s113 = sadd.s32 %s112, 1
      %s114 = scalar_select %p111, %s112, %s113
      %p117 = pneg %p111
      %p118 = scmp.eq.s32.totalorder %s32, 3
      %p119 = por %p117, %p118
      %p120 = scmp.ne.s32.totalorder %s112, %s115
      %p121 = scmp.eq.s32.totalorder %s32, 0
      %p122 = por %p120, %p121
      %p123 = scmp.ne.s32.totalorder %s112, %s115
      %p124 = scmp.eq.s32.totalorder %s37, 3
      %p125 = por %p123, %p124
      %p126 = scmp.ne.s32.totalorder %s115, %s116
      %p127 = scmp.eq.s32.totalorder %s37, 0
      %p128 = por %p126, %p127
      %p129 = scmp.ne.s32.totalorder %s115, %s116
      %p130 = scmp.eq.s32.totalorder %s38, 3
      %p131 = por %p129, %p130
      %p133 = scmp.ne.s32.totalorder %s116, %s132
      %p134 = scmp.eq.s32.totalorder %s38, 0
      %p135 = por %p133, %p134
      %p136 = scmp.le.s32.totalorder 1, %s32
      %p137 = scmp.lt.s32.totalorder %s32, 5
      %p138 = pnand %p136, %p137
      %p139 = pneg %p138
      // Predicated region
      $region9: #{tpu_custom_call.1} parent=5 // pred_check
        _
      $region10: #{tpu_custom_call.1} parent=5 // pred_check_branch
        %141 = sbr.rel (%p138) target = $region12
      $region11: #{tpu_custom_call.1} parent=5 // pred_region
        %s142 = ssub.s32 %s32, 1
      $region12: #{tpu_custom_call.1} parent=5 // pred_fallthru
        _
      %p143 = scmp.lt.s32.totalorder %s32, 4
      // Predicated region
      $region13: #{tpu_custom_call.1} parent=5 // pred_check
        %p144 = pneg %p143
      $region14: #{tpu_custom_call.1} parent=5 // pred_check_branch
        %146 = sbr.rel (%p144) target = $region16
      $region15: #{tpu_custom_call.1} parent=5 // pred_region
        // Predicated region
        $region17: #{tpu_custom_call.1} parent=15 // pred_check
          %p147 = pneg %p66
        $region18: #{tpu_custom_call.1} parent=15 // pred_check_branch
          %149 = sbr.rel (%p147) target = $region20
        $region19: #{tpu_custom_call.1} parent=15 // pred_region
          %s150 = sand.u32 %s56, 1
          %s151 = scalar_lea.sflag [#allocation6], %s150
          %s152 = sand.u32 %s56, 1
          %s153 = smul.addr %s152, 24
          %s154 = scalar_lea.vmem [#allocation5], %s153
          %156 = vsyncadd %s151, 0
          %s157 = smul.addr %s39, 6
          %s158 = sadd.s32 %s40, %s157
          %s159 = smul.addr %s158, 8
          %s160 = scalar_lea.hbm %s2, %s159
          %s161 = sshll.u32 %s160, 4
          %s162 = int_to_ptr.hbm [resolvable:$true] %s161
          %s163 = sshll.u32 %s154, 4
          %s164 = int_to_ptr.vmem [resolvable:$true] %s163
          %169 = dma.hbm_to_vmem [thread:$0]  %s162, 384, %s164, %s151, 256, 128, 8
        $region20: #{tpu_custom_call.1} parent=15 // pred_fallthru
          _
        // Predicated region
        $region21: #{tpu_custom_call.1} parent=15 // pred_check
          %p170 = pneg %p94
        $region22: #{tpu_custom_call.1} parent=15 // pred_check_branch
          %172 = sbr.rel (%p170) target = $region24
        $region23: #{tpu_custom_call.1} parent=15 // pred_region
          %s173 = sand.u32 %s84, 1
          %s174 = scalar_lea.sflag [#allocation9], %s173
          %s175 = sand.u32 %s84, 1
          %s176 = smul.addr %s175, 24
          %s177 = scalar_lea.vmem [#allocation8], %s176
          %179 = vsyncadd %s174, 0
          %s180 = smul.addr %s39, 6
          %s181 = sadd.s32 %s40, %s180
          %s182 = smul.addr %s181, 8
          %s183 = scalar_lea.hbm %s3, %s182
          %s184 = sshll.u32 %s183, 4
          %s185 = int_to_ptr.hbm [resolvable:$true] %s184
          %s186 = sshll.u32 %s177, 4
          %s187 = int_to_ptr.vmem [resolvable:$true] %s186
          %192 = dma.hbm_to_vmem [thread:$0]  %s185, 384, %s187, %s174, 256, 128, 8
        $region24: #{tpu_custom_call.1} parent=15 // pred_fallthru
          _
      $region16: #{tpu_custom_call.1} parent=5 // pred_fallthru
        _
      %p193 = scmp.le.s32.totalorder 1, %s32
      %p194 = scmp.lt.s32.totalorder %s32, 5
      %p195 = pnand %p193, %p194
      %p196 = pneg %p195
      // Predicated region
      $region25: #{tpu_custom_call.1} parent=5 // pred_check
        _
      $region26: #{tpu_custom_call.1} parent=5 // pred_check_branch
        %198 = sbr.rel (%p195) target = $region28
      $region27: #{tpu_custom_call.1} parent=5 // pred_region
        %s199 = ssub.s32 %s32, 1
        %s200 = sand.u32 %s59, 1
        %s201 = scalar_lea.sflag [#allocation6], %s200
        %s202 = sand.u32 %s59, 1
        %s203 = smul.addr %s202, 24
        %s204 = scalar_lea.vmem [#allocation5], %s203
        // Predicated region
        $region29: #{tpu_custom_call.1} parent=27 // pred_check
          %p205 = pneg %p72
        $region30: #{tpu_custom_call.1} parent=27 // pred_check_branch
          %207 = sbr.rel (%p205) target = $region32
        $region31: #{tpu_custom_call.1} parent=27 // pred_region
          %209 = dma.done %s201, 384
        $region32: #{tpu_custom_call.1} parent=27 // pred_fallthru
          _
        %s210 = sand.u32 %s87, 1
        %s211 = scalar_lea.sflag [#allocation9], %s210
        %s212 = sand.u32 %s87, 1
        %s213 = smul.addr %s212, 24
        %s214 = scalar_lea.vmem [#allocation8], %s213
        // Predicated region
        $region33: #{tpu_custom_call.1} parent=27 // pred_check
          %p215 = pneg %p100
        $region34: #{tpu_custom_call.1} parent=27 // pred_check_branch
          %217 = sbr.rel (%p215) target = $region36
        $region35: #{tpu_custom_call.1} parent=27 // pred_region
          %219 = dma.done %s211, 384
        $region36: #{tpu_custom_call.1} parent=27 // pred_fallthru
          _
        %s220 = sand.u32 %s59, 1
        %s221 = scalar_lea.sflag [#allocation6], %s220
        %s222 = sand.u32 %s59, 1
        %s223 = smul.addr %s222, 24
        %s224 = scalar_lea.vmem [#allocation5], %s223
        %p225 = pneg %p72
        %p226 = pneg %p69
        %s227 = sand.u32 %s87, 1
        %s228 = scalar_lea.sflag [#allocation9], %s227
        %s229 = sand.u32 %s87, 1
        %s230 = smul.addr %s229, 24
        %s231 = scalar_lea.vmem [#allocation8], %s230
        %p232 = pneg %p100
        %p233 = pneg %p97
        %p234 = pneg %p128
        %p235 = pneg %p125
        %s236 = sand.u32 %s115, 1
        %s237 = scalar_lea.sflag [#allocation7], %s236
        %s238 = sand.u32 %s115, 1
        %s239 = smul.addr %s238, 8
        %s240 = scalar_lea.vmem [#allocation10], %s239
        %s241 = sld [smem:[#allocation3 + %s41]]
        %s242 = ssub.f32 0.0, %s241
        %s243 = sld [smem:[#allocation4]]
        %v244 = vld [vmem:[%s204] sm:$0xff]
        %v245 = vstv %s243
        %v246 = vmul.f32 %v245, %v244
        %s247 = sld [smem:[#allocation4 + $0x1]]
        %s248 = scalar_lea.vmem %s204, 8 [#allocation5]
        %v249 = vld [vmem:[%s248] sm:$0xff]
        %v250 = vstv %s247
        %v251 = vmul.f32 %v250, %v249
        %v252 = vadd.f32 %v246, %v251
        %s253 = sld [smem:[#allocation4 + $0x2]]
        %s254 = scalar_lea.vmem %s204, 16 [#allocation5]
        %v255 = vld [vmem:[%s254] sm:$0xff]
        %v256 = vstv %s253
        %v257 = vmul.f32 %v256, %v255
        %v258 = vadd.f32 %v252, %v257
        %s259 = sld [smem:[#allocation4 + $0x3]]
        %v260 = vld [vmem:[%s214] sm:$0xff]
        %v261 = vstv %s259
        %v262 = vmul.f32 %v261, %v260
        %v263 = vadd.f32 %v258, %v262
        %s264 = sld [smem:[#allocation4 + $0x4]]
        %s265 = scalar_lea.vmem %s214, 8 [#allocation8]
        %v266 = vld [vmem:[%s265] sm:$0xff]
        %v267 = vstv %s264
        %v268 = vmul.f32 %v267, %v266
        %v269 = vadd.f32 %v263, %v268
        %s270 = sld [smem:[#allocation4 + $0x5]]
        %s271 = scalar_lea.vmem %s214, 16 [#allocation8]
        %v272 = vld [vmem:[%s271] sm:$0xff]
        %v273 = vstv %s270
        %v274 = vmul.f32 %v273, %v272
        %v275 = vadd.f32 %v269, %v274
        %v276 = vstv %s242
        %v277 = vrcp.pop %v275
        %v278 = vmul.f32 %v275, %v277
        %v279 = vsub.f32 1.0, %v278
        %v280 = vmul.f32 %v277, %v279
        %v281 = vadd.f32 %v277, %v280
        %vm282 = vweird.f32 %v275
        %vm283 = vweird.f32 %v277
        %vm284 = vmor %vm282, %vm283
        %v285 = vsel %vm284, %v277, %v281
        %v286 = vand.u32 2147483647, %v275
        %vm287 = vcmp.eq.f32.partialorder %v286, 8.507059e+37
        %v288 = vand.u32 %v275, 2147483648
        %v289 = vor.u32 1.1754944e-38, %v288
        %v290 = vsel %vm287, %v289, %v285
        %v291 = vmul.f32 %v276, %v290
        %vm292 = vcmp.gt.f32.partialorder %v291, 0.0
        %vm293 = vcmp.le.f32.partialorder %v291, 250.0
        %vm294 = vmand %vm292, %vm293
        %v295 = vsel %vm294, %v291, 0.0
        %296 = vst [vmem:[%s240] sm:$0xff] %v295
        %s297 = sand.u32 %s115, 1
        %s298 = scalar_lea.sflag [#allocation7], %s297
        %s299 = sand.u32 %s115, 1
        %s300 = smul.addr %s299, 8
        %s301 = scalar_lea.vmem [#allocation10], %s300
        // Predicated region
        $region37: #{tpu_custom_call.1} parent=27 // pred_check
          %p302 = pneg %p125
        $region38: #{tpu_custom_call.1} parent=27 // pred_check_branch
          %304 = sbr.rel (%p302) target = $region40
        $region39: #{tpu_custom_call.1} parent=27 // pred_region
          %306 = vsyncadd %s298, 0
          %s307 = smul.addr %s41, 2
          %s308 = sadd.s32 %s42, %s307
          %s309 = smul.addr %s308, 8
          %s310 = scalar_lea.hbm %s4, %s309
          %s312 = sshll.u32 %s301, 4
          %s313 = int_to_ptr.vmem [resolvable:$true] %s312
          %s314 = sshll.u32 %s310, 4
          %s315 = int_to_ptr.hbm [resolvable:$true] %s314
          %317 = dma.vmem_to_hbm [thread:$0]  %s313, 128, %s315, %s298
        $region40: #{tpu_custom_call.1} parent=27 // pred_fallthru
          _
      $region28: #{tpu_custom_call.1} parent=5 // pred_fallthru
        _
      %p318 = scmp.le.s32.totalorder 2, %s32
      // Predicated region
      $region41: #{tpu_custom_call.1} parent=5 // pred_check
        %p319 = pneg %p318
      $region42: #{tpu_custom_call.1} parent=5 // pred_check_branch
        %321 = sbr.rel (%p319) target = $region44
      $region43: #{tpu_custom_call.1} parent=5 // pred_region
        %s322 = ssub.s32 %s32, 2
        // Predicated region
        $region45: #{tpu_custom_call.1} parent=43 // pred_check
          %p323 = pneg %p131
        $region46: #{tpu_custom_call.1} parent=43 // pred_check_branch
          %325 = sbr.rel (%p323) target = $region48
        $region47: #{tpu_custom_call.1} parent=43 // pred_region
          %s326 = sand.u32 %s116, 1
          %s327 = scalar_lea.sflag [#allocation7], %s326
          %s328 = sand.u32 %s116, 1
          %s329 = smul.addr %s328, 8
          %s330 = scalar_lea.vmem [#allocation10], %s329
          %332 = dma.done %s327, 128
        $region48: #{tpu_custom_call.1} parent=43 // pred_fallthru
          _
      $region44: #{tpu_custom_call.1} parent=5 // pred_fallthru
        _
    $region6: #{tpu_custom_call.1} parent=1 // loop_footer
      %s36 = sadd.s32 1, %s32
    $region7: #{tpu_custom_call.1} parent=1 // loop_footer_branch
      %31 = sbr.rel target = $region3
    $region8: #{tpu_custom_call.1} parent=1 // loop_exit
      _
    %333 = vsyncpa [#allocation6], 1
    %s334 = scalar_lea.sflag [#allocation6], 1
    %335 = vsyncpa %s334, 1
    %336 = vsyncpa [#allocation9], 1
    %s337 = scalar_lea.sflag [#allocation9], 1
    %338 = vsyncpa %s337, 1
    %339 = vsyncpa [#allocation7], 1
    %s340 = scalar_lea.sflag [#allocation7], 1
    %341 = vsyncpa %s340, 1

</llo_original>
